<compile_context>
chip_gen: v6e
topology: v6e:2x2x1
jax: 0.10.0
libtpu: 0.0.40
codegen_flags: <defaults>
</compile_context>

<pallas_src>
import functools

import jax
import jax.numpy as jnp
from jax.experimental import pallas as pl
from jax.experimental.pallas import tpu as pltpu

LANE = 128          # TPU vreg lane width
BF16_SUBLANE = 16   # min sublane tile for bf16 operands


def _round_up(n, m):
    return (n + m - 1) // m * m


def mlp_kernel(x_ref, w1_ref, wrest_ref, b_ref, o_ref):
    """Whole MLP hot path in one kernel: 5 MXU matmuls + 4 ReLUs.

    x_ref:     (TB, IN_P)     bf16  -- batch chunk
    w1_ref:    (IN_P, 128)    bf16  -- layer-1 weights
    wrest_ref: (4, 128, 128)  bf16  -- layers 2..5 weights, stacked
    b_ref:     (8, 128)       f32   -- biases, rows 0..4 used
    o_ref:     (TB, 128)      f32   -- lane-dense padded output
    """
    cdt = w1_ref.dtype
    # Layer 1 (ReLU).
    a = jnp.dot(x_ref[...], w1_ref[...], preferred_element_type=jnp.float32)
    h = jnp.maximum(a + b_ref[0:1, :], 0.0).astype(cdt)
    # Layers 2..4 (ReLU) -- static unrolled loop over the stacked weights.
    for l in range(3):
        a = jnp.dot(h, wrest_ref[l], preferred_element_type=jnp.float32)
        h = jnp.maximum(a + b_ref[l + 1:l + 2, :], 0.0).astype(cdt)
    # Linear head (layer 5), lane-dense store.
    out = jnp.dot(h, wrest_ref[3], preferred_element_type=jnp.float32)
    o_ref[...] = (out + b_ref[4:5, :]).astype(o_ref.dtype)


def prepare_params(params, *, compute_dtype=jnp.bfloat16):
    """One-time padding/casting of the 5 (W, b) pairs into 3 kernel operands.

    params: list of 5 (W, b) with W: (fan_in, fan_out), b: (fan_out,).
    """
    assert len(params) == 5
    in_dim = params[0][0].shape[0]
    hidden = params[0][0].shape[1]
    out_dim = params[-1][0].shape[1]
    hid_p = _round_up(hidden, LANE)                 # 100 -> 128
    assert _round_up(out_dim, LANE) <= hid_p, "head wider than hidden not supported"

    # Layer-1 weights: keep the (small) input feature dim un-padded to 128;
    # only align it to the bf16 sublane tile.  Zero pad -> inert.
    in_p = _round_up(in_dim, BF16_SUBLANE)
    w1_p = jnp.zeros((in_p, hid_p), compute_dtype).at[:in_dim, :hidden].set(
        params[0][0].astype(compute_dtype))

    # Layers 2..5 weights stacked into one (4, 128, 128) bf16 operand.
    wrest = jnp.zeros((4, hid_p, hid_p), compute_dtype)
    for l, (w, _) in enumerate(params[1:]):
        fi, fo = w.shape
        wrest = wrest.at[l, :fi, :fo].set(w.astype(compute_dtype))

    # All 5 biases stacked into one (8, 128) f32 operand (rows 5..7 unused).
    biases = jnp.zeros((8, hid_p), jnp.float32)
    for l, (_, b) in enumerate(params):
        biases = biases.at[l, :b.shape[0]].set(b.reshape(-1).astype(jnp.float32))

    return dict(w1=w1_p, wrest=wrest, biases=biases,
                in_dim=in_dim, in_p=in_p, out_dim=out_dim, out_p=hid_p)


def mlp_forward(x, prepared, *, slice_output=True):
    """x: (B, input_dim) f32.  Returns (B, output_dim) f32."""
    B, in_dim = x.shape
    assert in_dim == prepared["in_dim"]
    in_p, out_p = prepared["in_p"], prepared["out_p"]
    w1, wrest, biases = prepared["w1"], prepared["wrest"], prepared["biases"]
    cdt = w1.dtype

    # ---- batch tiling ---------------------------------------------------
    if B <= 128:
        TB = _round_up(B, BF16_SUBLANE)          # single chunk, full bf16 tiles
    elif B <= 2 * 512:
        TB = _round_up(pl.cdiv(B, 2), LANE)      # >=2 chunks (v7x dual-TC)
    else:
        TB = 512                                 # amortize per-step overhead
    B_p = _round_up(B, TB)

    # Per-call work on x only: cast to bf16 + pad batch rows (heavy parameter
    # padding already hoisted into prepare_params).
    x_p = jnp.zeros((B_p, in_p), cdt).at[:B, :in_dim].set(x.astype(cdt))

    out_padded = pl.pallas_call(
        mlp_kernel,
        out_shape=jax.ShapeDtypeStruct((B_p, out_p), jnp.float32),
        grid=(B_p // TB,),
        in_specs=[
            pl.BlockSpec((TB, in_p), lambda i: (i, 0)),
            # Grid-invariant operands: constant index_map -> DMA'd once and
            # VMEM-resident across all batch chunks.
            pl.BlockSpec(w1.shape, lambda i: (0, 0)),
            pl.BlockSpec(wrest.shape, lambda i: (0, 0, 0)),
            pl.BlockSpec(biases.shape, lambda i: (0, 0)),
        ],
        out_specs=pl.BlockSpec((TB, out_p), lambda i: (i, 0)),
        compiler_params=pltpu.CompilerParams(
            dimension_semantics=("parallel",)),
    )(x_p, w1, wrest, biases)

    if slice_output:
        return out_padded[:B, :prepared["out_dim"]]
    return out_padded   # lane-dense (B_p, 128); cols >= out_dim are bias-only noise


def init_linear(key, fan_in, fan_out):
    # Mimics PyTorch nn.Linear init: U(-1/sqrt(fan_in), 1/sqrt(fan_in)).
    kw, kb = jax.random.split(key)
    bound = 1.0 / jnp.sqrt(fan_in)
    w = jax.random.uniform(kw, (fan_in, fan_out), jnp.float32, -bound, bound)
    b = jax.random.uniform(kb, (fan_out,), jnp.float32, -bound, bound)
    return w, b


if __name__ == "__main__":
    input_dim = 32
    hidden = 100
    output_dim = 10
    batch = 8

    key = jax.random.PRNGKey(0)
    keys = jax.random.split(key, 6)

    params = [
        init_linear(keys[0], input_dim, hidden),
        init_linear(keys[1], hidden, hidden),
        init_linear(keys[2], hidden, hidden),
        init_linear(keys[3], hidden, hidden),
        init_linear(keys[4], hidden, output_dim),
    ]
    x = jax.random.normal(keys[5], (batch, input_dim), jnp.float32)

    # One-time parameter preparation (hoisted out of the forward path).
    prepared = jax.tree_util.tree_map(jax.block_until_ready, prepare_params(params))

    fwd = jax.jit(functools.partial(mlp_forward, prepared=prepared))
    out = jax.block_until_ready(fwd(x))
    assert out.shape == (batch, output_dim)

    # Reference with identical arithmetic (bf16 matmul operands, f32 accum).
    ref = x
    for i, (w, b) in enumerate(params):
        ref = jnp.dot(ref.astype(jnp.bfloat16), w.astype(jnp.bfloat16),
                      preferred_element_type=jnp.float32) + b
        if i < len(params) - 1:
            ref = jnp.maximum(ref, 0.0)
    assert jnp.allclose(out, ref, atol=2e-3, rtol=2e-3)

    # Loose sanity check against the pure-f32 reference (PyTorch semantics).
    ref32 = x
    for i, (w, b) in enumerate(params):
        ref32 = ref32 @ w + b
        if i < len(params) - 1:
            ref32 = jnp.maximum(ref32, 0.0)
    assert jnp.allclose(out, ref32, atol=5e-2, rtol=5e-2)

    print("KERNEL_OK")
</pallas_src>

<mosaic_0001>
module attributes {stable_mosaic.version = 11 : i64} {
  func.func @mlp_kernel(%arg0: i32, %arg1: memref<16x32xbf16, #tpu.memory_space<vmem>>, %arg2: memref<32x128xbf16, #tpu.memory_space<vmem>>, %arg3: memref<4x128x128xbf16, #tpu.memory_space<vmem>>, %arg4: memref<8x128xf32, #tpu.memory_space<vmem>>, %arg5: memref<16x128xf32, #tpu.memory_space<vmem>>) attributes {dimension_semantics = [#tpu.dimension_semantics<parallel>], iteration_bounds = array<i64: 1>, scalar_prefetch = 0 : i64, scratch_operands = 0 : i64, tpu.core_type = #tpu.core_type<tc>, window_params = [{transform_indices = @transform_0, window_bounds = array<i64: 16, 32>}, {pipeline_mode = #tpu.pipeline_mode<synchronous>, transform_indices = @transform_1, window_bounds = array<i64: 32, 128>}, {pipeline_mode = #tpu.pipeline_mode<synchronous>, transform_indices = @transform_2, window_bounds = array<i64: 4, 128, 128>}, {pipeline_mode = #tpu.pipeline_mode<synchronous>, transform_indices = @transform_3, window_bounds = array<i64: 8, 128>}, {transform_indices = @transform_4, window_bounds = array<i64: 16, 128>}]} {
    %c0 = arith.constant 0 : index
    %c0_0 = arith.constant 0 : index
    %0 = vector.load %arg1[%c0, %c0_0] : memref<16x32xbf16, #tpu.memory_space<vmem>>, vector<16x32xbf16>
    %c0_1 = arith.constant 0 : index
    %c0_2 = arith.constant 0 : index
    %1 = vector.load %arg2[%c0_1, %c0_2] : memref<32x128xbf16, #tpu.memory_space<vmem>>, vector<32x128xbf16>
    %cst = arith.constant dense<0.000000e+00> : vector<16x128xf32>
    %2 = tpu.matmul %0, %1, %cst {dimension_numbers = #tpu.dot_dimension_numbers<[1], [0], [0], [1], [0, 0, 1, 1], [], []>} : vector<16x32xbf16>, vector<32x128xbf16>, vector<16x128xf32> -> vector<16x128xf32>
    %c0_3 = arith.constant 0 : index
    %c0_4 = arith.constant 0 : index
    %3 = vector.load %arg4[%c0_3, %c0_4] : memref<8x128xf32, #tpu.memory_space<vmem>>, vector<1x128xf32>
    %4 = vector.broadcast %3 : vector<1x128xf32> to vector<16x128xf32>
    %5 = arith.addf %2, %4 : vector<16x128xf32>
    %cst_5 = arith.constant 0.000000e+00 : f32
    %6 = vector.broadcast %cst_5 : f32 to vector<16x128xf32>
    %7 = arith.maximumf %5, %6 : vector<16x128xf32>
    %8 = arith.truncf %7 : vector<16x128xf32> to vector<16x128xbf16>
    %c0_6 = arith.constant 0 : index
    %c0_7 = arith.constant 0 : index
    %c0_8 = arith.constant 0 : index
    %9 = vector.load %arg3[%c0_6, %c0_7, %c0_8] : memref<4x128x128xbf16, #tpu.memory_space<vmem>>, vector<1x128x128xbf16>
    %10 = vector.shape_cast %9 : vector<1x128x128xbf16> to vector<128x128xbf16>
    %cst_9 = arith.constant dense<0.000000e+00> : vector<16x128xf32>
    %11 = tpu.matmul %8, %10, %cst_9 {dimension_numbers = #tpu.dot_dimension_numbers<[1], [0], [0], [1], [0, 0, 1, 1], [], []>} : vector<16x128xbf16>, vector<128x128xbf16>, vector<16x128xf32> -> vector<16x128xf32>
    %c1 = arith.constant 1 : index
    %c0_10 = arith.constant 0 : index
    %12 = vector.load %arg4[%c1, %c0_10] : memref<8x128xf32, #tpu.memory_space<vmem>>, vector<1x128xf32>
    %13 = vector.broadcast %12 : vector<1x128xf32> to vector<16x128xf32>
    %14 = arith.addf %11, %13 : vector<16x128xf32>
    %cst_11 = arith.constant 0.000000e+00 : f32
    %15 = vector.broadcast %cst_11 : f32 to vector<16x128xf32>
    %16 = arith.maximumf %14, %15 : vector<16x128xf32>
    %17 = arith.truncf %16 : vector<16x128xf32> to vector<16x128xbf16>
    %c1_12 = arith.constant 1 : index
    %c0_13 = arith.constant 0 : index
    %c0_14 = arith.constant 0 : index
    %18 = vector.load %arg3[%c1_12, %c0_13, %c0_14] : memref<4x128x128xbf16, #tpu.memory_space<vmem>>, vector<1x128x128xbf16>
    %19 = vector.shape_cast %18 : vector<1x128x128xbf16> to vector<128x128xbf16>
    %cst_15 = arith.constant dense<0.000000e+00> : vector<16x128xf32>
    %20 = tpu.matmul %17, %19, %cst_15 {dimension_numbers = #tpu.dot_dimension_numbers<[1], [0], [0], [1], [0, 0, 1, 1], [], []>} : vector<16x128xbf16>, vector<128x128xbf16>, vector<16x128xf32> -> vector<16x128xf32>
    %c2 = arith.constant 2 : index
    %c0_16 = arith.constant 0 : index
    %21 = vector.load %arg4[%c2, %c0_16] : memref<8x128xf32, #tpu.memory_space<vmem>>, vector<1x128xf32>
    %22 = vector.broadcast %21 : vector<1x128xf32> to vector<16x128xf32>
    %23 = arith.addf %20, %22 : vector<16x128xf32>
    %cst_17 = arith.constant 0.000000e+00 : f32
    %24 = vector.broadcast %cst_17 : f32 to vector<16x128xf32>
    %25 = arith.maximumf %23, %24 : vector<16x128xf32>
    %26 = arith.truncf %25 : vector<16x128xf32> to vector<16x128xbf16>
    %c2_18 = arith.constant 2 : index
    %c0_19 = arith.constant 0 : index
    %c0_20 = arith.constant 0 : index
    %27 = vector.load %arg3[%c2_18, %c0_19, %c0_20] : memref<4x128x128xbf16, #tpu.memory_space<vmem>>, vector<1x128x128xbf16>
    %28 = vector.shape_cast %27 : vector<1x128x128xbf16> to vector<128x128xbf16>
    %cst_21 = arith.constant dense<0.000000e+00> : vector<16x128xf32>
    %29 = tpu.matmul %26, %28, %cst_21 {dimension_numbers = #tpu.dot_dimension_numbers<[1], [0], [0], [1], [0, 0, 1, 1], [], []>} : vector<16x128xbf16>, vector<128x128xbf16>, vector<16x128xf32> -> vector<16x128xf32>
    %c3 = arith.constant 3 : index
    %c0_22 = arith.constant 0 : index
    %30 = vector.load %arg4[%c3, %c0_22] : memref<8x128xf32, #tpu.memory_space<vmem>>, vector<1x128xf32>
    %31 = vector.broadcast %30 : vector<1x128xf32> to vector<16x128xf32>
    %32 = arith.addf %29, %31 : vector<16x128xf32>
    %cst_23 = arith.constant 0.000000e+00 : f32
    %33 = vector.broadcast %cst_23 : f32 to vector<16x128xf32>
    %34 = arith.maximumf %32, %33 : vector<16x128xf32>
    %35 = arith.truncf %34 : vector<16x128xf32> to vector<16x128xbf16>
    %c3_24 = arith.constant 3 : index
    %c0_25 = arith.constant 0 : index
    %c0_26 = arith.constant 0 : index
    %36 = vector.load %arg3[%c3_24, %c0_25, %c0_26] : memref<4x128x128xbf16, #tpu.memory_space<vmem>>, vector<1x128x128xbf16>
    %37 = vector.shape_cast %36 : vector<1x128x128xbf16> to vector<128x128xbf16>
    %cst_27 = arith.constant dense<0.000000e+00> : vector<16x128xf32>
    %38 = tpu.matmul %35, %37, %cst_27 {dimension_numbers = #tpu.dot_dimension_numbers<[1], [0], [0], [1], [0, 0, 1, 1], [], []>} : vector<16x128xbf16>, vector<128x128xbf16>, vector<16x128xf32> -> vector<16x128xf32>
    %c4 = arith.constant 4 : index
    %c0_28 = arith.constant 0 : index
    %39 = vector.load %arg4[%c4, %c0_28] : memref<8x128xf32, #tpu.memory_space<vmem>>, vector<1x128xf32>
    %40 = vector.broadcast %39 : vector<1x128xf32> to vector<16x128xf32>
    %41 = arith.addf %38, %40 : vector<16x128xf32>
    %c0_29 = arith.constant 0 : index
    %c0_30 = arith.constant 0 : index
    %42 = vector.load %arg5[%c0_29, %c0_30] : memref<16x128xf32, #tpu.memory_space<vmem>>, vector<16x128xf32>
    tpu.vector_store %arg5[%c0_29, %c0_30], %41 {strides = array<i32>} : memref<16x128xf32, #tpu.memory_space<vmem>>, vector<16x128xf32>,
    return
  }
  func.func @transform_0(%arg0: i32) -> (i32, i32) {
    %c0_i32 = arith.constant 0 : i32
    %c0_i32_0 = arith.constant 0 : i32
    return %arg0, %c0_i32 : i32, i32
  }
  func.func @transform_1(%arg0: i32) -> (i32, i32) {
    %c0_i32 = arith.constant 0 : i32
    %c0_i32_0 = arith.constant 0 : i32
    %c0_i32_1 = arith.constant 0 : i32
    return %c0_i32, %c0_i32_0 : i32, i32
  }
  func.func @transform_2(%arg0: i32) -> (i32, i32, i32) {
    %c0_i32 = arith.constant 0 : i32
    %c0_i32_0 = arith.constant 0 : i32
    %c0_i32_1 = arith.constant 0 : i32
    %c0_i32_2 = arith.constant 0 : i32
    return %c0_i32, %c0_i32_0, %c0_i32_1 : i32, i32, i32
  }
  func.func @transform_3(%arg0: i32) -> (i32, i32) {
    %c0_i32 = arith.constant 0 : i32
    %c0_i32_0 = arith.constant 0 : i32
    %c0_i32_1 = arith.constant 0 : i32
    return %c0_i32, %c0_i32_0 : i32, i32
  }
  func.func @transform_4(%arg0: i32) -> (i32, i32) {
    %c0_i32 = arith.constant 0 : i32
    %c0_i32_0 = arith.constant 0 : i32
    return %arg0, %c0_i32 : i32, i32
  }
}

</mosaic_0001>

<llo_original>
// kernel: mlp_forward.1
$region0: #{mlp_forward.1}
  #allocation0 [shape = 'u32[]', space=smem, size = 0x4, offset = 0x4, fixed_abs, tag = 'smem constant byte address 0x4 - core index']
  #allocation1 [shape = 'u32[144,128]{1,0:T(1,128)}', space=vmem, size = 0x12000, scoped, tag = 'internal scratch']
  %s0 = inlined_call_operand.vmem [shape: bf16[16,32], index: 0, kind: input, shape index: {}]
  %s1 = inlined_call_operand.vmem [shape: bf16[32,128], index: 1, kind: input, shape index: {}]
  %s2 = inlined_call_operand.hbm [shape: bf16[4,128,128], index: 2, kind: input, shape index: {}]
  %s3 = inlined_call_operand.vmem [shape: f32[8,128], index: 3, kind: input, shape index: {}]
  %s4 = inlined_call_operand.vmem [shape: f32[16,128], index: 4, kind: output, shape index: {}]
  %s5 = sld [smem:[#allocation0]]
  $region30: #{mlp_forward.1} parent=0
    _
  %s7 = ssub.s32 1, %s5
  %s8 = scalar_select 0, %s7, %s5
  $region1: #{mlp_forward.1} parent=0
    #allocation2 [shape = 'u8[131072]{0}', space=vmem, size = 0x20000, scoped, tag = 'input window, operand 2, single buffered']
    #allocation3 [shape = 's32[1]{0}', space=sflag, size = 0x4, scoped, tag = 'scoped memory for mlp_forward.1']
    %9 = vsyncpa [#allocation3], 0
    // Predicated region
    $region2: #{mlp_forward.1} parent=1 // pred_check
      _
    $region3: #{mlp_forward.1} parent=1 // pred_check_branch
      %11 = sbr.rel (0) target = $region5
    $region4: #{mlp_forward.1} parent=1 // pred_region
      _
    $region5: #{mlp_forward.1} parent=1 // pred_fallthru
      _
    // Predicated region
    $region6: #{mlp_forward.1} parent=1 // pred_check
      _
    $region7: #{mlp_forward.1} parent=1 // pred_check_branch
      %13 = sbr.rel (0) target = $region9
    $region8: #{mlp_forward.1} parent=1 // pred_region
      _
    $region9: #{mlp_forward.1} parent=1 // pred_fallthru
      _
    // Predicated region
    $region10: #{mlp_forward.1} parent=1 // pred_check
      _
    $region11: #{mlp_forward.1} parent=1 // pred_check_branch
      %15 = sbr.rel (0) target = $region13
    $region12: #{mlp_forward.1} parent=1 // pred_region
      %s17 = ssub.s32 4096, 4096
      %18 = vsyncadd [#allocation3], %s17
      %s19 = sshll.u32 [#allocation2], 4
      %s20 = int_to_ptr.vmem [resolvable:$true] %s19
      %25 = dma.hbm_to_vmem [thread:$0]  %s2, 4096, %s20, [#allocation3], 64, 64, 4
    $region13: #{mlp_forward.1} parent=1 // pred_fallthru
      _
    // Predicated region
    $region14: #{mlp_forward.1} parent=1 // pred_check
      _
    $region15: #{mlp_forward.1} parent=1 // pred_check_branch
      %27 = sbr.rel (0) target = $region17
    $region16: #{mlp_forward.1} parent=1 // pred_region
      _
    $region17: #{mlp_forward.1} parent=1 // pred_fallthru
      _
    // Predicated region
    $region18: #{mlp_forward.1} parent=1 // pred_check
      _
    $region19: #{mlp_forward.1} parent=1 // pred_check_branch
      %29 = sbr.rel (0) target = $region21
    $region20: #{mlp_forward.1} parent=1 // pred_region
      %30 = dma.done [#allocation3], 4096
    $region21: #{mlp_forward.1} parent=1 // pred_fallthru
      _
    %v32 = vld [vmem:[%s0] sm:$0xf]
    %v33 = vld [vmem:[%s0 + $0x4] sm:$0xf]
    %v34 = vld [vmem:[%s1] sm:$0xf]
    %v35 = vld [vmem:[%s1 + $0x4] sm:$0xf]
    %v36 = vld [vmem:[%s1 + $0x8] sm:$0xf]
    %v37 = vld [vmem:[%s1 + $0xc] sm:$0xf]
    %v38 = vld [vmem:[%s3] sm:$0x1]
    %v39 = vlaneseq
    %v40 = vshrl.u32 %v39, 7
    %v41 = vsub.s32 0, %v40
    %v42 = vrot.slane %v38, %v41
    %v45 = vunpack.c.l.b16 %v32
    %v46 = vunpack.c.l.b16 %v33
    %v47 = vpack.c.b16 %v46, %v45
    %v52 = vunpack.c.l.b16 %v34
    %v53 = vunpack.c.l.b16 %v35
    %v54 = vunpack.c.l.b16 %v36
    %v55 = vunpack.c.l.b16 %v37
    %v56 = vpack.c.b16 %v53, %v52
    %v57 = vpack.c.b16 %v55, %v54
    %vm60 = vcmask 261120
    %v62 = vsel %vm60, %v47, 0
    %64 = vmatprep.subr.bf16.mxu0 0
    %65 = vmatpush1.bf16.msra.mxu0 0
    %66 = vmatprep.subr.bf16.mxu0 0
    %67 = vmatpush1.bf16.msra.mxu0 0
    %68 = vmatprep.subr.bf16.mxu0 0
    %69 = vmatpush1.bf16.msra.mxu0 0
    %70 = vmatprep.subr.bf16.mxu0 0
    %71 = vmatpush1.bf16.msra.mxu0 0
    %72 = vmatprep.subr.bf16.mxu0 0
    %73 = vmatpush1.bf16.msra.mxu0 0
    %74 = vmatprep.subr.bf16.mxu0 0
    %75 = vmatpush1.bf16.msra.mxu0 0
    %76 = vmatprep.subr.bf16.mxu0 0
    %77 = vmatpush1.bf16.msra.mxu0 %v57
    %78 = vmatprep.subr.bf16.mxu0 0
    %79 = vmatpush1.bf16.msra.mxu0 %v56
    %80 = vmatprep.subr.bf16.mxu0 0
    %81 = vmatpush2.bf16.msra.mxu0 0
    %82 = vmatprep.subr.bf16.mxu0 0
    %83 = vmatpush2.bf16.msra.mxu0 0
    %84 = vmatprep.subr.bf16.mxu0 0
    %85 = vmatpush2.bf16.msra.mxu0 0
    %86 = vmatprep.subr.bf16.mxu0 0
    %87 = vmatpush2.bf16.msra.mxu0 0
    %88 = vmatprep.subr.bf16.mxu0 0
    %89 = vmatpush2.bf16.msra.mxu0 0
    %90 = vmatprep.subr.bf16.mxu0 0
    %91 = vmatpush2.bf16.msra.mxu0 0
    %92 = vmatprep.subr.bf16.mxu0 0
    %93 = vmatpush2.bf16.msra.mxu0 0
    %94 = vmatprep.subr.bf16.mxu0 0
    %95 = vmatpush2.bf16.msra.mxu0 0
    %96 = vmatprep.mubr.bf16.mxu0 0
    %97 = vmatmul.mubr.bf16.gmra.mxu0 %v62
    %v98 = vpop.f32.mrf.mxu0
    %v99 = vadd.f32 %v42, %v98
    %v100 = vpop.f32.mrf.mxu0
    %v101 = vpop.f32.mrf.mxu0
    %v102 = vadd.f32 %v42, %v101
    %v103 = vpop.f32.mrf.mxu0
    %104 = vdwg.mxu0
    %v105 = vmax.f32 %v99, 0.0
    %v106 = vmax.f32 %v102, 0.0
    %v107 = vpack.c.bf16 %v106, %v105
    %v108 = vld [vmem:[#allocation2] sm:$0xf]
    %v109 = vld [vmem:[#allocation2 + $0x4] sm:$0xf]
    %v110 = vld [vmem:[#allocation2 + $0x8] sm:$0xf]
    %v111 = vld [vmem:[#allocation2 + $0xc] sm:$0xf]
    %v112 = vld [vmem:[#allocation2 + $0x10] sm:$0xf]
    %v113 = vld [vmem:[#allocation2 + $0x14] sm:$0xf]
    %v114 = vld [vmem:[#allocation2 + $0x18] sm:$0xf]
    %v115 = vld [vmem:[#allocation2 + $0x1c] sm:$0xf]
    %v116 = vld [vmem:[#allocation2 + $0x20] sm:$0xf]
    %v117 = vld [vmem:[#allocation2 + $0x24] sm:$0xf]
    %v118 = vld [vmem:[#allocation2 + $0x28] sm:$0xf]
    %v119 = vld [vmem:[#allocation2 + $0x2c] sm:$0xf]
    %v120 = vld [vmem:[#allocation2 + $0x30] sm:$0xf]
    %v121 = vld [vmem:[#allocation2 + $0x34] sm:$0xf]
    %v122 = vld [vmem:[#allocation2 + $0x38] sm:$0xf]
    %v123 = vld [vmem:[#allocation2 + $0x3c] sm:$0xf]
    %v124 = vld [vmem:[%s3 + $0x1] sm:$0x1]
    %v125 = vlaneseq
    %v126 = vshrl.u32 %v125, 7
    %v127 = vsub.s32 0, %v126
    %v128 = vrot.slane %v124, %v127
    %v145 = vunpack.c.l.b16 %v108
    %v146 = vunpack.c.l.b16 %v109
    %v147 = vunpack.c.l.b16 %v110
    %v148 = vunpack.c.l.b16 %v111
    %v149 = vunpack.c.l.b16 %v112
    %v150 = vunpack.c.l.b16 %v113
    %v151 = vunpack.c.l.b16 %v114
    %v152 = vunpack.c.l.b16 %v115
    %v153 = vunpack.c.l.b16 %v116
    %v154 = vunpack.c.l.b16 %v117
    %v155 = vunpack.c.l.b16 %v118
    %v156 = vunpack.c.l.b16 %v119
    %v157 = vunpack.c.l.b16 %v120
    %v158 = vunpack.c.l.b16 %v121
    %v159 = vunpack.c.l.b16 %v122
    %v160 = vunpack.c.l.b16 %v123
    %v161 = vpack.c.b16 %v146, %v145
    %v162 = vpack.c.b16 %v148, %v147
    %v163 = vpack.c.b16 %v150, %v149
    %v164 = vpack.c.b16 %v152, %v151
    %v165 = vpack.c.b16 %v154, %v153
    %v166 = vpack.c.b16 %v156, %v155
    %v167 = vpack.c.b16 %v158, %v157
    %v168 = vpack.c.b16 %v160, %v159
    %177 = vmatprep.subr.bf16.mxu0 0
    %178 = vmatpush1.bf16.msra.mxu0 %v168
    %179 = vmatprep.subr.bf16.mxu0 0
    %180 = vmatpush1.bf16.msra.mxu0 %v167
    %181 = vmatprep.subr.bf16.mxu0 0
    %182 = vmatpush1.bf16.msra.mxu0 %v166
    %183 = vmatprep.subr.bf16.mxu0 0
    %184 = vmatpush1.bf16.msra.mxu0 %v165
    %185 = vmatprep.subr.bf16.mxu0 0
    %186 = vmatpush1.bf16.msra.mxu0 %v164
    %187 = vmatprep.subr.bf16.mxu0 0
    %188 = vmatpush1.bf16.msra.mxu0 %v163
    %189 = vmatprep.subr.bf16.mxu0 0
    %190 = vmatpush1.bf16.msra.mxu0 %v162
    %191 = vmatprep.subr.bf16.mxu0 0
    %192 = vmatpush1.bf16.msra.mxu0 %v161
    %193 = vmatprep.subr.bf16.mxu0 0
    %194 = vmatpush2.bf16.msra.mxu0 0
    %195 = vmatprep.subr.bf16.mxu0 0
    %196 = vmatpush2.bf16.msra.mxu0 0
    %197 = vmatprep.subr.bf16.mxu0 0
    %198 = vmatpush2.bf16.msra.mxu0 0
    %199 = vmatprep.subr.bf16.mxu0 0
    %200 = vmatpush2.bf16.msra.mxu0 0
    %201 = vmatprep.subr.bf16.mxu0 0
    %202 = vmatpush2.bf16.msra.mxu0 0
    %203 = vmatprep.subr.bf16.mxu0 0
    %204 = vmatpush2.bf16.msra.mxu0 0
    %205 = vmatprep.subr.bf16.mxu0 0
    %206 = vmatpush2.bf16.msra.mxu0 0
    %207 = vmatprep.subr.bf16.mxu0 0
    %208 = vmatpush2.bf16.msra.mxu0 0
    %209 = vmatprep.mubr.bf16.mxu0 0
    %210 = vmatmul.mubr.bf16.gmra.mxu0 %v107
    %v211 = vpop.f32.mrf.mxu0
    %v212 = vadd.f32 %v128, %v211
    %v213 = vpop.f32.mrf.mxu0
    %v214 = vpop.f32.mrf.mxu0
    %v215 = vadd.f32 %v128, %v214
    %v216 = vpop.f32.mrf.mxu0
    %217 = vdwg.mxu0
    %v218 = vmax.f32 %v212, 0.0
    %v219 = vmax.f32 %v215, 0.0
    %v220 = vpack.c.bf16 %v219, %v218
    %s221 = scalar_lea.vmem [#allocation2], 64
    %v222 = vld [vmem:[%s221] sm:$0xf]
    %v223 = vld [vmem:[%s221 + $0x4] sm:$0xf]
    %v224 = vld [vmem:[%s221 + $0x8] sm:$0xf]
    %v225 = vld [vmem:[%s221 + $0xc] sm:$0xf]
    %v226 = vld [vmem:[%s221 + $0x10] sm:$0xf]
    %v227 = vld [vmem:[%s221 + $0x14] sm:$0xf]
    %v228 = vld [vmem:[%s221 + $0x18] sm:$0xf]
    %v229 = vld [vmem:[%s221 + $0x1c] sm:$0xf]
    %v230 = vld [vmem:[%s221 + $0x20] sm:$0xf]
    %v231 = vld [vmem:[%s221 + $0x24] sm:$0xf]
    %v232 = vld [vmem:[%s221 + $0x28] sm:$0xf]
    %v233 = vld [vmem:[%s221 + $0x2c] sm:$0xf]
    %v234 = vld [vmem:[%s221 + $0x30] sm:$0xf]
    %v235 = vld [vmem:[%s221 + $0x34] sm:$0xf]
    %v236 = vld [vmem:[%s221 + $0x38] sm:$0xf]
    %v237 = vld [vmem:[%s221 + $0x3c] sm:$0xf]
    %v238 = vld [vmem:[%s3 + $0x2] sm:$0x1]
    %v239 = vlaneseq
    %v240 = vshrl.u32 %v239, 7
    %v241 = vsub.s32 0, %v240
    %v242 = vrot.slane %v238, %v241
    %v259 = vunpack.c.l.b16 %v222
    %v260 = vunpack.c.l.b16 %v223
    %v261 = vunpack.c.l.b16 %v224
    %v262 = vunpack.c.l.b16 %v225
    %v263 = vunpack.c.l.b16 %v226
    %v264 = vunpack.c.l.b16 %v227
    %v265 = vunpack.c.l.b16 %v228
    %v266 = vunpack.c.l.b16 %v229
    %v267 = vunpack.c.l.b16 %v230
    %v268 = vunpack.c.l.b16 %v231
    %v269 = vunpack.c.l.b16 %v232
    %v270 = vunpack.c.l.b16 %v233
    %v271 = vunpack.c.l.b16 %v234
    %v272 = vunpack.c.l.b16 %v235
    %v273 = vunpack.c.l.b16 %v236
    %v274 = vunpack.c.l.b16 %v237
    %v275 = vpack.c.b16 %v260, %v259
    %v276 = vpack.c.b16 %v262, %v261
    %v277 = vpack.c.b16 %v264, %v263
    %v278 = vpack.c.b16 %v266, %v265
    %v279 = vpack.c.b16 %v268, %v267
    %v280 = vpack.c.b16 %v270, %v269
    %v281 = vpack.c.b16 %v272, %v271
    %v282 = vpack.c.b16 %v274, %v273
    %291 = vmatprep.subr.bf16.mxu0 0
    %292 = vmatpush1.bf16.msra.mxu0 %v282
    %293 = vmatprep.subr.bf16.mxu0 0
    %294 = vmatpush1.bf16.msra.mxu0 %v281
    %295 = vmatprep.subr.bf16.mxu0 0
    %296 = vmatpush1.bf16.msra.mxu0 %v280
    %297 = vmatprep.subr.bf16.mxu0 0
    %298 = vmatpush1.bf16.msra.mxu0 %v279
    %299 = vmatprep.subr.bf16.mxu0 0
    %300 = vmatpush1.bf16.msra.mxu0 %v278
    %301 = vmatprep.subr.bf16.mxu0 0
    %302 = vmatpush1.bf16.msra.mxu0 %v277
    %303 = vmatprep.subr.bf16.mxu0 0
    %304 = vmatpush1.bf16.msra.mxu0 %v276
    %305 = vmatprep.subr.bf16.mxu0 0
    %306 = vmatpush1.bf16.msra.mxu0 %v275
    %307 = vmatprep.subr.bf16.mxu0 0
    %308 = vmatpush2.bf16.msra.mxu0 0
    %309 = vmatprep.subr.bf16.mxu0 0
    %310 = vmatpush2.bf16.msra.mxu0 0
    %311 = vmatprep.subr.bf16.mxu0 0
    %312 = vmatpush2.bf16.msra.mxu0 0
    %313 = vmatprep.subr.bf16.mxu0 0
    %314 = vmatpush2.bf16.msra.mxu0 0
    %315 = vmatprep.subr.bf16.mxu0 0
    %316 = vmatpush2.bf16.msra.mxu0 0
    %317 = vmatprep.subr.bf16.mxu0 0
    %318 = vmatpush2.bf16.msra.mxu0 0
    %319 = vmatprep.subr.bf16.mxu0 0
    %320 = vmatpush2.bf16.msra.mxu0 0
    %321 = vmatprep.subr.bf16.mxu0 0
    %322 = vmatpush2.bf16.msra.mxu0 0
    %323 = vmatprep.mubr.bf16.mxu0 0
    %324 = vmatmul.mubr.bf16.gmra.mxu0 %v220
    %v325 = vpop.f32.mrf.mxu0
    %v326 = vadd.f32 %v242, %v325
    %v327 = vpop.f32.mrf.mxu0
    %v328 = vpop.f32.mrf.mxu0
    %v329 = vadd.f32 %v242, %v328
    %v330 = vpop.f32.mrf.mxu0
    %331 = vdwg.mxu0
    %v332 = vmax.f32 %v326, 0.0
    %v333 = vmax.f32 %v329, 0.0
    %v334 = vpack.c.bf16 %v333, %v332
    %s335 = scalar_lea.vmem [#allocation2], 128
    %v336 = vld [vmem:[%s335] sm:$0xf]
    %v337 = vld [vmem:[%s335 + $0x4] sm:$0xf]
    %v338 = vld [vmem:[%s335 + $0x8] sm:$0xf]
    %v339 = vld [vmem:[%s335 + $0xc] sm:$0xf]
    %v340 = vld [vmem:[%s335 + $0x10] sm:$0xf]
    %v341 = vld [vmem:[%s335 + $0x14] sm:$0xf]
    %v342 = vld [vmem:[%s335 + $0x18] sm:$0xf]
    %v343 = vld [vmem:[%s335 + $0x1c] sm:$0xf]
    %v344 = vld [vmem:[%s335 + $0x20] sm:$0xf]
    %v345 = vld [vmem:[%s335 + $0x24] sm:$0xf]
    %v346 = vld [vmem:[%s335 + $0x28] sm:$0xf]
    %v347 = vld [vmem:[%s335 + $0x2c] sm:$0xf]
    %v348 = vld [vmem:[%s335 + $0x30] sm:$0xf]
    %v349 = vld [vmem:[%s335 + $0x34] sm:$0xf]
    %v350 = vld [vmem:[%s335 + $0x38] sm:$0xf]
    %v351 = vld [vmem:[%s335 + $0x3c] sm:$0xf]
    %v352 = vld [vmem:[%s3 + $0x3] sm:$0x1]
    %v353 = vlaneseq
    %v354 = vshrl.u32 %v353, 7
    %v355 = vsub.s32 0, %v354
    %v356 = vrot.slane %v352, %v355
    %v373 = vunpack.c.l.b16 %v336
    %v374 = vunpack.c.l.b16 %v337
    %v375 = vunpack.c.l.b16 %v338
    %v376 = vunpack.c.l.b16 %v339
    %v377 = vunpack.c.l.b16 %v340
    %v378 = vunpack.c.l.b16 %v341
    %v379 = vunpack.c.l.b16 %v342
    %v380 = vunpack.c.l.b16 %v343
    %v381 = vunpack.c.l.b16 %v344
    %v382 = vunpack.c.l.b16 %v345
    %v383 = vunpack.c.l.b16 %v346
    %v384 = vunpack.c.l.b16 %v347
    %v385 = vunpack.c.l.b16 %v348
    %v386 = vunpack.c.l.b16 %v349
    %v387 = vunpack.c.l.b16 %v350
    %v388 = vunpack.c.l.b16 %v351
    %v389 = vpack.c.b16 %v374, %v373
    %v390 = vpack.c.b16 %v376, %v375
    %v391 = vpack.c.b16 %v378, %v377
    %v392 = vpack.c.b16 %v380, %v379
    %v393 = vpack.c.b16 %v382, %v381
    %v394 = vpack.c.b16 %v384, %v383
    %v395 = vpack.c.b16 %v386, %v385
    %v396 = vpack.c.b16 %v388, %v387
    %405 = vmatprep.subr.bf16.mxu0 0
    %406 = vmatpush1.bf16.msra.mxu0 %v396
    %407 = vmatprep.subr.bf16.mxu0 0
    %408 = vmatpush1.bf16.msra.mxu0 %v395
    %409 = vmatprep.subr.bf16.mxu0 0
    %410 = vmatpush1.bf16.msra.mxu0 %v394
    %411 = vmatprep.subr.bf16.mxu0 0
    %412 = vmatpush1.bf16.msra.mxu0 %v393
    %413 = vmatprep.subr.bf16.mxu0 0
    %414 = vmatpush1.bf16.msra.mxu0 %v392
    %415 = vmatprep.subr.bf16.mxu0 0
    %416 = vmatpush1.bf16.msra.mxu0 %v391
    %417 = vmatprep.subr.bf16.mxu0 0
    %418 = vmatpush1.bf16.msra.mxu0 %v390
    %419 = vmatprep.subr.bf16.mxu0 0
    %420 = vmatpush1.bf16.msra.mxu0 %v389
    %421 = vmatprep.subr.bf16.mxu0 0
    %422 = vmatpush2.bf16.msra.mxu0 0
    %423 = vmatprep.subr.bf16.mxu0 0
    %424 = vmatpush2.bf16.msra.mxu0 0
    %425 = vmatprep.subr.bf16.mxu0 0
    %426 = vmatpush2.bf16.msra.mxu0 0
    %427 = vmatprep.subr.bf16.mxu0 0
    %428 = vmatpush2.bf16.msra.mxu0 0
    %429 = vmatprep.subr.bf16.mxu0 0
    %430 = vmatpush2.bf16.msra.mxu0 0
    %431 = vmatprep.subr.bf16.mxu0 0
    %432 = vmatpush2.bf16.msra.mxu0 0
    %433 = vmatprep.subr.bf16.mxu0 0
    %434 = vmatpush2.bf16.msra.mxu0 0
    %435 = vmatprep.subr.bf16.mxu0 0
    %436 = vmatpush2.bf16.msra.mxu0 0
    %437 = vmatprep.mubr.bf16.mxu0 0
    %438 = vmatmul.mubr.bf16.gmra.mxu0 %v334
    %v439 = vpop.f32.mrf.mxu0
    %v440 = vadd.f32 %v356, %v439
    %v441 = vpop.f32.mrf.mxu0
    %v442 = vpop.f32.mrf.mxu0
    %v443 = vadd.f32 %v356, %v442
    %v444 = vpop.f32.mrf.mxu0
    %445 = vdwg.mxu0
    %v446 = vmax.f32 %v440, 0.0
    %v447 = vmax.f32 %v443, 0.0
    %v448 = vpack.c.bf16 %v447, %v446
    %s449 = scalar_lea.vmem [#allocation2], 192
    %v450 = vld [vmem:[%s449] sm:$0xf]
    %v451 = vld [vmem:[%s449 + $0x4] sm:$0xf]
    %v452 = vld [vmem:[%s449 + $0x8] sm:$0xf]
    %v453 = vld [vmem:[%s449 + $0xc] sm:$0xf]
    %v454 = vld [vmem:[%s449 + $0x10] sm:$0xf]
    %v455 = vld [vmem:[%s449 + $0x14] sm:$0xf]
    %v456 = vld [vmem:[%s449 + $0x18] sm:$0xf]
    %v457 = vld [vmem:[%s449 + $0x1c] sm:$0xf]
    %v458 = vld [vmem:[%s449 + $0x20] sm:$0xf]
    %v459 = vld [vmem:[%s449 + $0x24] sm:$0xf]
    %v460 = vld [vmem:[%s449 + $0x28] sm:$0xf]
    %v461 = vld [vmem:[%s449 + $0x2c] sm:$0xf]
    %v462 = vld [vmem:[%s449 + $0x30] sm:$0xf]
    %v463 = vld [vmem:[%s449 + $0x34] sm:$0xf]
    %v464 = vld [vmem:[%s449 + $0x38] sm:$0xf]
    %v465 = vld [vmem:[%s449 + $0x3c] sm:$0xf]
    %v466 = vld [vmem:[%s3 + $0x4] sm:$0x1]
    %v467 = vlaneseq
    %v468 = vshrl.u32 %v467, 7
    %v469 = vsub.s32 0, %v468
    %v470 = vrot.slane %v466, %v469
    %v487 = vunpack.c.l.b16 %v450
    %v488 = vunpack.c.l.b16 %v451
    %v489 = vunpack.c.l.b16 %v452
    %v490 = vunpack.c.l.b16 %v453
    %v491 = vunpack.c.l.b16 %v454
    %v492 = vunpack.c.l.b16 %v455
    %v493 = vunpack.c.l.b16 %v456
    %v494 = vunpack.c.l.b16 %v457
    %v495 = vunpack.c.l.b16 %v458
    %v496 = vunpack.c.l.b16 %v459
    %v497 = vunpack.c.l.b16 %v460
    %v498 = vunpack.c.l.b16 %v461
    %v499 = vunpack.c.l.b16 %v462
    %v500 = vunpack.c.l.b16 %v463
    %v501 = vunpack.c.l.b16 %v464
    %v502 = vunpack.c.l.b16 %v465
    %v503 = vpack.c.b16 %v488, %v487
    %v504 = vpack.c.b16 %v490, %v489
    %v505 = vpack.c.b16 %v492, %v491
    %v506 = vpack.c.b16 %v494, %v493
    %v507 = vpack.c.b16 %v496, %v495
    %v508 = vpack.c.b16 %v498, %v497
    %v509 = vpack.c.b16 %v500, %v499
    %v510 = vpack.c.b16 %v502, %v501
    %519 = vmatprep.subr.bf16.mxu0 0
    %520 = vmatpush1.bf16.msra.mxu0 %v510
    %521 = vmatprep.subr.bf16.mxu0 0
    %522 = vmatpush1.bf16.msra.mxu0 %v509
    %523 = vmatprep.subr.bf16.mxu0 0
    %524 = vmatpush1.bf16.msra.mxu0 %v508
    %525 = vmatprep.subr.bf16.mxu0 0
    %526 = vmatpush1.bf16.msra.mxu0 %v507
    %527 = vmatprep.subr.bf16.mxu0 0
    %528 = vmatpush1.bf16.msra.mxu0 %v506
    %529 = vmatprep.subr.bf16.mxu0 0
    %530 = vmatpush1.bf16.msra.mxu0 %v505
    %531 = vmatprep.subr.bf16.mxu0 0
    %532 = vmatpush1.bf16.msra.mxu0 %v504
    %533 = vmatprep.subr.bf16.mxu0 0
    %534 = vmatpush1.bf16.msra.mxu0 %v503
    %535 = vmatprep.subr.bf16.mxu0 0
    %536 = vmatpush2.bf16.msra.mxu0 0
    %537 = vmatprep.subr.bf16.mxu0 0
    %538 = vmatpush2.bf16.msra.mxu0 0
    %539 = vmatprep.subr.bf16.mxu0 0
    %540 = vmatpush2.bf16.msra.mxu0 0
    %541 = vmatprep.subr.bf16.mxu0 0
    %542 = vmatpush2.bf16.msra.mxu0 0
    %543 = vmatprep.subr.bf16.mxu0 0
    %544 = vmatpush2.bf16.msra.mxu0 0
    %545 = vmatprep.subr.bf16.mxu0 0
    %546 = vmatpush2.bf16.msra.mxu0 0
    %547 = vmatprep.subr.bf16.mxu0 0
    %548 = vmatpush2.bf16.msra.mxu0 0
    %549 = vmatprep.subr.bf16.mxu0 0
    %550 = vmatpush2.bf16.msra.mxu0 0
    %551 = vmatprep.mubr.bf16.mxu0 0
    %552 = vmatmul.mubr.bf16.gmra.mxu0 %v448
    %v553 = vpop.f32.mrf.mxu0
    %v554 = vadd.f32 %v470, %v553
    %v555 = vpop.f32.mrf.mxu0
    %v556 = vpop.f32.mrf.mxu0
    %v557 = vadd.f32 %v470, %v556
    %v558 = vpop.f32.mrf.mxu0
    %559 = vdwg.mxu0
    %560 = vst [vmem:[%s4] sm:$0xff] %v554
    %561 = vst [vmem:[%s4 + $0x8] sm:$0xff] %v557
    // Predicated region
    $region22: #{mlp_forward.1} parent=1 // pred_check
      _
    $region23: #{mlp_forward.1} parent=1 // pred_check_branch
      %563 = sbr.rel (0) target = $region25
    $region24: #{mlp_forward.1} parent=1 // pred_region
      _
    $region25: #{mlp_forward.1} parent=1 // pred_fallthru
      _
    // Predicated region
    $region26: #{mlp_forward.1} parent=1 // pred_check
      _
    $region27: #{mlp_forward.1} parent=1 // pred_check_branch
      %565 = sbr.rel (0) target = $region29
    $region28: #{mlp_forward.1} parent=1 // pred_region
      _
    $region29: #{mlp_forward.1} parent=1 // pred_fallthru
      _
    %566 = vsyncpa [#allocation3], 1

</llo_original>
